<compile_context>
chip_gen: v7x
topology: tpu7x:2x2x1
jax: 0.10.0
libtpu: 0.0.40
codegen_flags: <defaults>
</compile_context>

<pallas_src>
import jax
import jax.numpy as jnp
from jax.experimental import pallas as pl
from jax.experimental.pallas import tpu as pltpu


LANE = 128
_FEATURE_RESIDENT_BYTES = 8 * 1024 * 1024   # keep X / XW VMEM-resident if it fits


def _round_up(x, m):
    return ((x + m - 1) // m) * m


_VMEM_CAP_CACHE = [None]


def _vmem_cap_bytes():
    """Per-generation cap on vmem_limit_bytes (physical VMEM minus headroom)."""
    if _VMEM_CAP_CACHE[0] is None:
        cap = 48 * 1024 * 1024            # safe everywhere (v7x: 64 MiB per TC)
        try:
            phys = int(pltpu.get_tpu_info().vmem_capacity_bytes)
            # >=16 MiB headroom for compiler-internal scratch; no point past ~100 MiB.
            cap = max(cap, min(phys - 16 * 1024 * 1024, 100 * 1024 * 1024))
        except Exception:
            pass
        _VMEM_CAP_CACHE[0] = cap
    return _VMEM_CAP_CACHE[0]


def _make_gcn_kernel(apply_w: bool, features_resident: bool, tk: int,
                     negative_slope: float = 0.01, threshold: float = 0.5):
    """Kernel factory.

    apply_w=True  -> finalize does acc @ W (W resident in bf16).
    apply_w=False -> the streamed features are already X @ W.
    features_resident=True -> feature ref is the whole (N_pad, F) matrix; slice it.
    """

    def compute(a_ref, m_ref, w_ref, b_ref, h_ref, hc_ref, acc_ref):
        k = pl.program_id(1)

        @pl.when(k == 0)
        def _init():
            acc_ref[...] = jnp.zeros_like(acc_ref)

        if features_resident:
            start = pl.multiple_of(k * tk, tk)
            m_tile = m_ref[pl.ds(start, tk), :]
        else:
            m_tile = m_ref[...]

        # Dominant stream: bf16 A_hat tile @ bf16 feature tile -> f32 accumulator.
        acc_ref[...] += jnp.dot(a_ref[...], m_tile,
                                preferred_element_type=jnp.float32)

        @pl.when(k == pl.num_programs(1) - 1)
        def _finalize():
            acc = acc_ref[...]
            if apply_w:
                # bf16 x bf16 on the MXU, f32 accumulation (inputs already bf16-rounded).
                h = jnp.dot(acc.astype(jnp.bfloat16), w_ref[...],
                            preferred_element_type=jnp.float32)
            else:
                h = acc
            h = h + b_ref[...]
            # F.leaky_relu, default negative_slope = 0.01
            h = jnp.where(h >= 0.0, h, negative_slope * h)
            h_ref[...] = h.astype(h_ref.dtype)
            # vectorized form of the Python double loop (>= 0.5 -> 1 else 0)
            hc_ref[...] = (h >= threshold).astype(hc_ref.dtype)

    if apply_w:
        def body(a_ref, m_ref, w_ref, b_ref, h_ref, hc_ref, acc_ref):
            compute(a_ref, m_ref, w_ref, b_ref, h_ref, hc_ref, acc_ref)
    else:
        def body(a_ref, m_ref, b_ref, h_ref, hc_ref, acc_ref):
            compute(a_ref, m_ref, None, b_ref, h_ref, hc_ref, acc_ref)
    return body


@jax.jit
def gcn_forward(a_hat, x, w, b):
    """Single GraphConv layer: leaky_relu(A_hat @ X @ W + b) and its >=0.5 mask."""
    N = a_hat.shape[0]
    in_feats, h_feats = w.shape

    # Pick the matmul association so the N^2-sized matmul runs over min(in, h).
    apply_w = in_feats <= h_feats
    Hp = _round_up(h_feats, LANE)

    # ---- node-dim padding & tile selection --------------------------------
    if N <= 1024:
        N_pad = _round_up(max(N, 8), LANE)
        TK = N_pad
        TM = max(N_pad // 2, 64)         # >=2 row tiles so both v7x cores get work
    else:
        N_pad = _round_up(N, 512)
        TK = 2048 if N_pad % 2048 == 0 else (1024 if N_pad % 1024 == 0 else 512)
        TM = 1024 if N_pad % 1024 == 0 else 512

    # ---- operands: build padded bf16 directly (no f32 pad pre-pass) -------
    a_bf = a_hat.astype(jnp.bfloat16)
    if N_pad != N:
        a_bf = jnp.pad(a_bf, ((0, N_pad - N), (0, N_pad - N)))

    if apply_w:
        F = _round_up(in_feats, LANE)
        m_bf = x.astype(jnp.bfloat16)
        if (N_pad != N) or (F != in_feats):
            m_bf = jnp.pad(m_bf, ((0, N_pad - N), (0, F - in_feats)))
        w_bf = w.astype(jnp.bfloat16)
        if (F != in_feats) or (Hp != h_feats):
            w_bf = jnp.pad(w_bf, ((0, F - in_feats), (0, Hp - h_feats)))
    else:
        # Precompute the cheap X @ W once in XLA; the kernel then only streams A_hat.
        xw = jnp.dot(x, w, preferred_element_type=jnp.float32)
        F = Hp
        m_bf = xw.astype(jnp.bfloat16)
        if (N_pad != N) or (Hp != h_feats):
            m_bf = jnp.pad(m_bf, ((0, N_pad - N), (0, Hp - h_feats)))
        w_bf = None

    b_pad = b.reshape(1, -1).astype(jnp.float32)
    if Hp != h_feats:
        b_pad = jnp.pad(b_pad, ((0, 0), (0, Hp - h_feats)))

    features_resident = (N_pad * F * 2) <= _FEATURE_RESIDENT_BYTES
    grid = (N_pad // TM, N_pad // TK)

    in_specs = [pl.BlockSpec((TM, TK), lambda i, k: (i, k))]          # A_hat stream
    operands = [a_bf]
    if features_resident:
        in_specs.append(pl.BlockSpec((N_pad, F), lambda i, k: (0, 0)))  # resident X/XW
    else:
        in_specs.append(pl.BlockSpec((TK, F), lambda i, k: (k, 0)))     # streamed X/XW
    operands.append(m_bf)
    if apply_w:
        in_specs.append(pl.BlockSpec((F, Hp), lambda i, k: (0, 0)))     # W resident (bf16)
        operands.append(w_bf)
    in_specs.append(pl.BlockSpec((1, Hp), lambda i, k: (0, 0)))         # bias resident
    operands.append(b_pad)

    out_specs = (
        pl.BlockSpec((TM, Hp), lambda i, k: (i, 0)),   # h    (f32, lane-dense)
        pl.BlockSpec((TM, Hp), lambda i, k: (i, 0)),   # mask (int8)
    )
    out_shape = (
        jax.ShapeDtypeStruct((N_pad, Hp), jnp.float32),
        jax.ShapeDtypeStruct((N_pad, Hp), jnp.int8),
    )

    # ---- VMEM budget: real double-buffered footprint + 25% margin ---------
    vmem_bytes = (
        2 * TM * TK * 2                                                   # A tiles (bf16, x2 bufs)
        + (2 * N_pad * F * 2 if features_resident else 2 * TK * F * 2)    # features
        + (F * Hp * 2 if apply_w else 0)                                  # W (resident, bf16)
        + Hp * 4                                                          # bias
        + TM * Hp * 4                                                     # f32 accumulator scratch
        + 2 * TM * Hp * 4                                                 # h output
        + 2 * TM * Hp * 1                                                 # mask output
    )
    vmem_limit = int(min(_vmem_cap_bytes(),
                         max(32 * 1024 * 1024,
                             int(vmem_bytes * 1.25) + (2 << 20))))

    kernel = _make_gcn_kernel(apply_w, features_resident, TK)

    h_pad, hc_pad = pl.pallas_call(
        kernel,
        out_shape=out_shape,
        grid_spec=pltpu.PrefetchScalarGridSpec(
            num_scalar_prefetch=0,
            grid=grid,
            in_specs=in_specs,
            out_specs=out_specs,
            scratch_shapes=[pltpu.VMEM((TM, Hp), jnp.float32)],
        ),
        compiler_params=pltpu.CompilerParams(
            dimension_semantics=("parallel", "arbitrary"),
            vmem_limit_bytes=vmem_limit,
        ),
    )(*operands)

    h = h_pad[:N, :h_feats]
    h_clone = hc_pad[:N, :h_feats].astype(jnp.float32)
    return h, h_clone


def make_normalized_adjacency(key, n_nodes):
    # synthetic symmetric graph with self-loops (DGL GraphConv norm='both')
    a = (jax.random.uniform(key, (n_nodes, n_nodes)) > 0.5).astype(jnp.float32)
    a = jnp.maximum(a, a.T)
    a = jnp.maximum(a, jnp.eye(n_nodes, dtype=jnp.float32))
    deg = jnp.sum(a, axis=1)
    d_inv_sqrt = 1.0 / jnp.sqrt(deg)
    return d_inv_sqrt[:, None] * a * d_inv_sqrt[None, :]


def _run_and_check(N, in_feats, h_feats, seed):
    key = jax.random.PRNGKey(seed)
    k_a, k_x, k_w, k_b = jax.random.split(key, 4)

    a_hat = make_normalized_adjacency(k_a, N)
    x = jax.random.normal(k_x, (N, in_feats), dtype=jnp.float32)
    bound = (6.0 / (in_feats + h_feats)) ** 0.5
    w = jax.random.uniform(k_w, (in_feats, h_feats), minval=-bound, maxval=bound,
                           dtype=jnp.float32)
    b = 0.1 * jax.random.normal(k_b, (h_feats,), dtype=jnp.float32)

    h, h_clone = gcn_forward(a_hat, x, w, b)
    jax.block_until_ready((h, h_clone))

    # Reference mirroring the kernel's bf16 input rounding (f32 accumulation).
    a_r = a_hat.astype(jnp.bfloat16).astype(jnp.float32)
    if in_feats <= h_feats:
        x_r = x.astype(jnp.bfloat16).astype(jnp.float32)
        acc = a_r @ x_r
        w_r = w.astype(jnp.bfloat16).astype(jnp.float32)
        h_ref = acc.astype(jnp.bfloat16).astype(jnp.float32) @ w_r + b[None, :]
    else:
        xw_r = (x @ w).astype(jnp.bfloat16).astype(jnp.float32)
        h_ref = a_r @ xw_r + b[None, :]
    h_ref = jnp.where(h_ref >= 0.0, h_ref, 0.01 * h_ref)

    assert h.shape == (N, h_feats) and h_clone.shape == (N, h_feats)
    assert jnp.allclose(h, h_ref, atol=2e-3, rtol=2e-3), "h mismatch"
    # mask must be exactly consistent with the kernel's own h
    assert jnp.array_equal(h_clone, (h >= 0.5).astype(jnp.float32)), "h_clone mismatch"


if __name__ == "__main__":
    # small shapes consistent with the module's forward
    _run_and_check(N=8, in_feats=16, h_feats=32, seed=0)   # (A X) W path
    _run_and_check(N=8, in_feats=64, h_feats=32, seed=0)   # A (X W) path
    print("KERNEL_OK")
</pallas_src>

<mosaic_0001>
module attributes {stable_mosaic.version = 11 : i64} {
  func.func @body(%arg0: i32, %arg1: i32, %arg2: memref<64x128xbf16, #tpu.memory_space<vmem>>, %arg3: memref<128x128xbf16, #tpu.memory_space<vmem>>, %arg4: memref<128x128xbf16, #tpu.memory_space<vmem>>, %arg5: memref<1x128xf32, #tpu.memory_space<vmem>>, %arg6: memref<64x128xf32, #tpu.memory_space<vmem>>, %arg7: memref<64x128xi8, #tpu.memory_space<vmem>>, %arg8: memref<64x128xf32, #tpu.memory_space<vmem>>) attributes {dimension_semantics = [#tpu.dimension_semantics<parallel>, #tpu.dimension_semantics<arbitrary>], iteration_bounds = array<i64: 2, 1>, scalar_prefetch = 0 : i64, scratch_operands = 1 : i64, tpu.core_type = #tpu.core_type<tc>, window_params = [{transform_indices = @transform_0, window_bounds = array<i64: 64, 128>}, {pipeline_mode = #tpu.pipeline_mode<synchronous>, transform_indices = @transform_1, window_bounds = array<i64: 128, 128>}, {pipeline_mode = #tpu.pipeline_mode<synchronous>, transform_indices = @transform_2, window_bounds = array<i64: 128, 128>}, {pipeline_mode = #tpu.pipeline_mode<synchronous>, transform_indices = @transform_3, window_bounds = array<i64: 1, 128>}, {transform_indices = @transform_4, window_bounds = array<i64: 64, 128>}, {transform_indices = @transform_5, window_bounds = array<i64: 64, 128>}]} {
    %c0_i32 = arith.constant 0 : i32
    %0 = arith.cmpi eq, %arg1, %c0_i32 : i32
    %1 = arith.extui %0 : i1 to i32
    %c0_i32_0 = arith.constant 0 : i32
    %2 = arith.cmpi ne, %1, %c0_i32_0 : i32
    scf.if %2 {
      %cst_9 = arith.constant 0.000000e+00 : f32
      %15 = vector.broadcast %cst_9 : f32 to vector<64x128xf32>
      %c0_10 = arith.constant 0 : index
      %c0_11 = arith.constant 0 : index
      %16 = vector.load %arg8[%c0_10, %c0_11] : memref<64x128xf32, #tpu.memory_space<vmem>>, vector<64x128xf32>
      tpu.vector_store %arg8[%c0_10, %c0_11], %15 {strides = array<i32>} : memref<64x128xf32, #tpu.memory_space<vmem>>, vector<64x128xf32>,
    } else {
    }
    %c128_i32 = arith.constant 128 : i32
    %3 = arith.muli %arg1, %c128_i32 : i32
    %4 = tpu.assume_multiple %3, 128 : i32
    %5 = arith.index_cast %4 : i32 to index
    %c0 = arith.constant 0 : index
    %6 = vector.load %arg3[%5, %c0] : memref<128x128xbf16, #tpu.memory_space<vmem>>, vector<128x128xbf16>
    %c0_1 = arith.constant 0 : index
    %c0_2 = arith.constant 0 : index
    %7 = vector.load %arg8[%c0_1, %c0_2] : memref<64x128xf32, #tpu.memory_space<vmem>>, vector<64x128xf32>
    %c0_3 = arith.constant 0 : index
    %c0_4 = arith.constant 0 : index
    %8 = vector.load %arg2[%c0_3, %c0_4] : memref<64x128xbf16, #tpu.memory_space<vmem>>, vector<64x128xbf16>
    %cst = arith.constant dense<0.000000e+00> : vector<64x128xf32>
    %9 = tpu.matmul %8, %6, %cst {dimension_numbers = #tpu.dot_dimension_numbers<[1], [0], [0], [1], [0, 0, 1, 1], [], []>} : vector<64x128xbf16>, vector<128x128xbf16>, vector<64x128xf32> -> vector<64x128xf32>
    %10 = arith.addf %7, %9 : vector<64x128xf32>
    %c0_5 = arith.constant 0 : index
    %c0_6 = arith.constant 0 : index
    %11 = vector.load %arg8[%c0_5, %c0_6] : memref<64x128xf32, #tpu.memory_space<vmem>>, vector<64x128xf32>
    tpu.vector_store %arg8[%c0_5, %c0_6], %10 {strides = array<i32>} : memref<64x128xf32, #tpu.memory_space<vmem>>, vector<64x128xf32>,
    %c0_i32_7 = arith.constant 0 : i32
    %12 = arith.cmpi eq, %arg1, %c0_i32_7 : i32
    %13 = arith.extui %12 : i1 to i32
    %c0_i32_8 = arith.constant 0 : i32
    %14 = arith.cmpi ne, %13, %c0_i32_8 : i32
    scf.if %14 {
      %c0_9 = arith.constant 0 : index
      %c0_10 = arith.constant 0 : index
      %15 = vector.load %arg8[%c0_9, %c0_10] : memref<64x128xf32, #tpu.memory_space<vmem>>, vector<64x128xf32>
      %16 = arith.truncf %15 : vector<64x128xf32> to vector<64x128xbf16>
      %c0_11 = arith.constant 0 : index
      %c0_12 = arith.constant 0 : index
      %17 = vector.load %arg4[%c0_11, %c0_12] : memref<128x128xbf16, #tpu.memory_space<vmem>>, vector<128x128xbf16>
      %cst_13 = arith.constant dense<0.000000e+00> : vector<64x128xf32>
      %18 = tpu.matmul %16, %17, %cst_13 {dimension_numbers = #tpu.dot_dimension_numbers<[1], [0], [0], [1], [0, 0, 1, 1], [], []>} : vector<64x128xbf16>, vector<128x128xbf16>, vector<64x128xf32> -> vector<64x128xf32>
      %c0_14 = arith.constant 0 : index
      %c0_15 = arith.constant 0 : index
      %19 = vector.load %arg5[%c0_14, %c0_15] : memref<1x128xf32, #tpu.memory_space<vmem>>, vector<1x128xf32>
      %20 = vector.broadcast %19 : vector<1x128xf32> to vector<64x128xf32>
      %21 = arith.addf %18, %20 : vector<64x128xf32>
      %cst_16 = arith.constant 0.000000e+00 : f32
      %22 = vector.broadcast %cst_16 : f32 to vector<64x128xf32>
      %23 = arith.cmpf oge, %21, %22 : vector<64x128xf32>
      %cst_17 = arith.constant 0.00999999977 : f32
      %24 = vector.broadcast %cst_17 : f32 to vector<64x128xf32>
      %25 = arith.mulf %24, %21 : vector<64x128xf32>
      %26 = arith.select %23, %21, %25 : vector<64x128xi1>, vector<64x128xf32>
      %c0_18 = arith.constant 0 : index
      %c0_19 = arith.constant 0 : index
      %27 = vector.load %arg6[%c0_18, %c0_19] : memref<64x128xf32, #tpu.memory_space<vmem>>, vector<64x128xf32>
      tpu.vector_store %arg6[%c0_18, %c0_19], %26 {strides = array<i32>} : memref<64x128xf32, #tpu.memory_space<vmem>>, vector<64x128xf32>,
      %cst_20 = arith.constant 5.000000e-01 : f32
      %28 = vector.broadcast %cst_20 : f32 to vector<64x128xf32>
      %29 = arith.cmpf oge, %26, %28 : vector<64x128xf32>
      %30 = arith.extui %29 : vector<64x128xi1> to vector<64x128xi8>
      %c0_21 = arith.constant 0 : index
      %c0_22 = arith.constant 0 : index
      %31 = vector.load %arg7[%c0_21, %c0_22] : memref<64x128xi8, #tpu.memory_space<vmem>>, vector<64x128xi8>
      tpu.vector_store %arg7[%c0_21, %c0_22], %30 {strides = array<i32>} : memref<64x128xi8, #tpu.memory_space<vmem>>, vector<64x128xi8>,
    } else {
    }
    return
  }
  func.func @transform_0(%arg0: i32, %arg1: i32) -> (i32, i32) {
    %c0_i32 = arith.constant 0 : i32
    return %arg0, %arg1 : i32, i32
  }
  func.func @transform_1(%arg0: i32, %arg1: i32) -> (i32, i32) {
    %c0_i32 = arith.constant 0 : i32
    %c0_i32_0 = arith.constant 0 : i32
    %c0_i32_1 = arith.constant 0 : i32
    return %c0_i32, %c0_i32_0 : i32, i32
  }
  func.func @transform_2(%arg0: i32, %arg1: i32) -> (i32, i32) {
    %c0_i32 = arith.constant 0 : i32
    %c0_i32_0 = arith.constant 0 : i32
    %c0_i32_1 = arith.constant 0 : i32
    return %c0_i32, %c0_i32_0 : i32, i32
  }
  func.func @transform_3(%arg0: i32, %arg1: i32) -> (i32, i32) {
    %c0_i32 = arith.constant 0 : i32
    %c0_i32_0 = arith.constant 0 : i32
    %c0_i32_1 = arith.constant 0 : i32
    return %c0_i32, %c0_i32_0 : i32, i32
  }
  func.func @transform_4(%arg0: i32, %arg1: i32) -> (i32, i32) {
    %c0_i32 = arith.constant 0 : i32
    %c0_i32_0 = arith.constant 0 : i32
    return %arg0, %c0_i32 : i32, i32
  }
  func.func @transform_5(%arg0: i32, %arg1: i32) -> (i32, i32) {
    %c0_i32 = arith.constant 0 : i32
    %c0_i32_0 = arith.constant 0 : i32
    return %arg0, %c0_i32 : i32, i32
  }
}

</mosaic_0001>

<llo_original>
// kernel: gcn_forward.1
$region0: #{gcn_forward.1}
  #allocation0 [shape = 'u32[]', space=smem, size = 0x4, offset = 0x4, fixed_abs, tag = 'smem constant byte address 0x4 - core index']
  #allocation1 [shape = 'u32[144,128]{1,0:T(1,128)}', space=vmem, size = 0x12000, scoped, tag = 'internal scratch']
  #allocation2 [shape = 'f32[64,128]{1,0:T(8,128)}', space=vmem, size = 0x8000, scoped, tag = 'scratch operand']
  %s0 = inlined_call_operand.vmem [shape: bf16[128,128], index: 0, kind: input, shape index: {}]
  %s1 = inlined_call_operand.vmem [shape: bf16[128,128], index: 1, kind: input, shape index: {}]
  %s2 = inlined_call_operand.vmem [shape: bf16[128,128], index: 2, kind: input, shape index: {}]
  %s3 = inlined_call_operand.vmem [shape: f32[1,128], index: 3, kind: input, shape index: {}]
  %s4 = inlined_call_operand.vmem [shape: f32[128,128], index: 4, kind: output, shape index: {0}]
  %s5 = inlined_call_operand.vmem [shape: s8[128,128], index: 5, kind: output, shape index: {1}]
  %6 = xla_tuple %s4, %s5
  %s7 = sld [smem:[#allocation0]]
  $region65: #{gcn_forward.1} parent=0
    _
  %s9 = ssub.s32 1, %s7
  %s10 = scalar_select 0, %s9, %s7
  loop: start=0, step=1, limit=4
  $region2: #{gcn_forward.1} parent=0 // loop_pre_header
    _
  $region3: #{gcn_forward.1} parent=0 // loop_header
    %s12 = sphi 0, %s16
    %p13 = scmp.ge.s32.totalorder %s12, 4
    %s19 = sphi 0, %s31
    %s20 = sphi 0, %s27
    %s21 = sphi 0, %s19
    %s22 = sphi 0, %s20
    %s23 = sphi 0, %s21
    %s24 = sphi 0, %s22
    %s36 = sphi 0, %s38
    %s39 = sphi 0, %s36
    %s40 = sphi 0, %s39
    %s56 = sphi 0, %s40
    %s60 = sphi 0, %s60
    %s62 = sphi 0, %s60
    %s63 = sphi 0, %s62
    %s77 = sphi 0, %s63
    %s81 = sphi 0, %s81
    %s83 = sphi 0, %s81
    %s84 = sphi 0, %s83
    %s98 = sphi 0, %s84
    %s102 = sphi 0, %s102
    %s104 = sphi 0, %s102
    %s105 = sphi 0, %s104
    %s119 = sphi 0, %s105
    %s125 = sphi 0, %s127
    %s128 = sphi 0, %s125
    %s129 = sphi 0, %s128
    %s145 = sphi 0, %s129
    %s151 = sphi 0, %s153
    %s154 = sphi 0, %s151
    %s155 = sphi 0, %s154
    %s171 = sphi 0, %s155
  $region4: #{gcn_forward.1} parent=0 // loop_header_branch
    %15 = sbr.rel (%p13) target = $region8
  $region5: #{gcn_forward.1} parent=0 // loop_body
    %s17 = ssub.s32 %s12, 1
    %s18 = ssub.s32 %s12, 2
    %s25 = sadd.s32 1, %s20
    %p26 = scmp.ge.s32.totalorder %s25, 1
    %s27 = scalar_select %p26, 0, %s25
    %s28 = sadd.s32 1, %s19
    %s29 = scalar_select %p26, %s28, %s19
    %p30 = scmp.ge.s32.totalorder %s29, 2
    %s31 = scalar_select %p30, 0, %s29
    %s32 = ssub.s32 %s19, %s31
    %s33 = ssub.s32 %s20, %s27
    %s34 = sor.u32 %s32, %s33
    %p35 = scmp.eq.s32.totalorder %s34, 0
    %s37 = sadd.s32 %s36, 1
    %s38 = scalar_select %p35, %s36, %s37
    %p41 = pneg %p35
    %p42 = scmp.eq.s32.totalorder %s12, 1
    %p43 = por %p41, %p42
    %p44 = scmp.ne.s32.totalorder %s36, %s39
    %p45 = scmp.eq.s32.totalorder %s12, 0
    %p46 = por %p44, %p45
    %p47 = scmp.ne.s32.totalorder %s36, %s39
    %p48 = scmp.eq.s32.totalorder %s17, 1
    %p49 = por %p47, %p48
    %p50 = scmp.ne.s32.totalorder %s39, %s40
    %p51 = scmp.eq.s32.totalorder %s17, 0
    %p52 = por %p50, %p51
    %p53 = scmp.ne.s32.totalorder %s39, %s40
    %p54 = scmp.eq.s32.totalorder %s18, 1
    %p55 = por %p53, %p54
    %p57 = scmp.ne.s32.totalorder %s40, %s56
    %p58 = scmp.eq.s32.totalorder %s18, 0
    %p59 = por %p57, %p58
    %s61 = sadd.s32 %s60, 1
    %p64 = scmp.eq.s32.totalorder %s12, 1
    %p65 = scmp.ne.s32.totalorder %s60, %s62
    %p66 = scmp.eq.s32.totalorder %s12, 0
    %p67 = por %p65, %p66
    %p68 = scmp.ne.s32.totalorder %s60, %s62
    %p69 = scmp.eq.s32.totalorder %s17, 1
    %p70 = por %p68, %p69
    %p71 = scmp.ne.s32.totalorder %s62, %s63
    %p72 = scmp.eq.s32.totalorder %s17, 0
    %p73 = por %p71, %p72
    %p74 = scmp.ne.s32.totalorder %s62, %s63
    %p75 = scmp.eq.s32.totalorder %s18, 1
    %p76 = por %p74, %p75
    %p78 = scmp.ne.s32.totalorder %s63, %s77
    %p79 = scmp.eq.s32.totalorder %s18, 0
    %p80 = por %p78, %p79
    %s82 = sadd.s32 %s81, 1
    %p85 = scmp.eq.s32.totalorder %s12, 1
    %p86 = scmp.ne.s32.totalorder %s81, %s83
    %p87 = scmp.eq.s32.totalorder %s12, 0
    %p88 = por %p86, %p87
    %p89 = scmp.ne.s32.totalorder %s81, %s83
    %p90 = scmp.eq.s32.totalorder %s17, 1
    %p91 = por %p89, %p90
    %p92 = scmp.ne.s32.totalorder %s83, %s84
    %p93 = scmp.eq.s32.totalorder %s17, 0
    %p94 = por %p92, %p93
    %p95 = scmp.ne.s32.totalorder %s83, %s84
    %p96 = scmp.eq.s32.totalorder %s18, 1
    %p97 = por %p95, %p96
    %p99 = scmp.ne.s32.totalorder %s84, %s98
    %p100 = scmp.eq.s32.totalorder %s18, 0
    %p101 = por %p99, %p100
    %s103 = sadd.s32 %s102, 1
    %p106 = scmp.eq.s32.totalorder %s12, 1
    %p107 = scmp.ne.s32.totalorder %s102, %s104
    %p108 = scmp.eq.s32.totalorder %s12, 0
    %p109 = por %p107, %p108
    %p110 = scmp.ne.s32.totalorder %s102, %s104
    %p111 = scmp.eq.s32.totalorder %s17, 1
    %p112 = por %p110, %p111
    %p113 = scmp.ne.s32.totalorder %s104, %s105
    %p114 = scmp.eq.s32.totalorder %s17, 0
    %p115 = por %p113, %p114
    %p116 = scmp.ne.s32.totalorder %s104, %s105
    %p117 = scmp.eq.s32.totalorder %s18, 1
    %p118 = por %p116, %p117
    %p120 = scmp.ne.s32.totalorder %s105, %s119
    %p121 = scmp.eq.s32.totalorder %s18, 0
    %p122 = por %p120, %p121
    %s123 = ssub.s32 %s19, %s31
    %p124 = scmp.eq.s32.totalorder %s123, 0
    %s126 = sadd.s32 %s125, 1
    %s127 = scalar_select %p124, %s125, %s126
    %p130 = pneg %p124
    %p131 = scmp.eq.s32.totalorder %s12, 1
    %p132 = por %p130, %p131
    %p133 = scmp.ne.s32.totalorder %s125, %s128
    %p134 = scmp.eq.s32.totalorder %s12, 0
    %p135 = por %p133, %p134
    %p136 = scmp.ne.s32.totalorder %s125, %s128
    %p137 = scmp.eq.s32.totalorder %s17, 1
    %p138 = por %p136, %p137
    %p139 = scmp.ne.s32.totalorder %s128, %s129
    %p140 = scmp.eq.s32.totalorder %s17, 0
    %p141 = por %p139, %p140
    %p142 = scmp.ne.s32.totalorder %s128, %s129
    %p143 = scmp.eq.s32.totalorder %s18, 1
    %p144 = por %p142, %p143
    %p146 = scmp.ne.s32.totalorder %s129, %s145
    %p147 = scmp.eq.s32.totalorder %s18, 0
    %p148 = por %p146, %p147
    %s149 = ssub.s32 %s19, %s31
    %p150 = scmp.eq.s32.totalorder %s149, 0
    %s152 = sadd.s32 %s151, 1
    %s153 = scalar_select %p150, %s151, %s152
    %p156 = pneg %p150
    %p157 = scmp.eq.s32.totalorder %s12, 1
    %p158 = por %p156, %p157
    %p159 = scmp.ne.s32.totalorder %s151, %s154
    %p160 = scmp.eq.s32.totalorder %s12, 0
    %p161 = por %p159, %p160
    %p162 = scmp.ne.s32.totalorder %s151, %s154
    %p163 = scmp.eq.s32.totalorder %s17, 1
    %p164 = por %p162, %p163
    %p165 = scmp.ne.s32.totalorder %s154, %s155
    %p166 = scmp.eq.s32.totalorder %s17, 0
    %p167 = por %p165, %p166
    %p168 = scmp.ne.s32.totalorder %s154, %s155
    %p169 = scmp.eq.s32.totalorder %s18, 1
    %p170 = por %p168, %p169
    %p172 = scmp.ne.s32.totalorder %s155, %s171
    %p173 = scmp.eq.s32.totalorder %s18, 0
    %p174 = por %p172, %p173
    %p175 = scmp.le.s32.totalorder 1, %s12
    %p176 = scmp.lt.s32.totalorder %s12, 3
    %p177 = pnand %p175, %p176
    %p178 = pneg %p177
    // Predicated region
    $region9: #{gcn_forward.1} parent=5 // pred_check
      _
    $region10: #{gcn_forward.1} parent=5 // pred_check_branch
      %180 = sbr.rel (%p177) target = $region12
    $region11: #{gcn_forward.1} parent=5 // pred_region
      %s181 = ssub.s32 %s12, 1
      // Predicated region
      $region13: #{gcn_forward.1} parent=11 // pred_check
        %p182 = pneg %p73
      $region14: #{gcn_forward.1} parent=11 // pred_check_branch
        %184 = sbr.rel (%p182) target = $region16
      $region15: #{gcn_forward.1} parent=11 // pred_region
        _
      $region16: #{gcn_forward.1} parent=11 // pred_fallthru
        _
      // Predicated region
      $region17: #{gcn_forward.1} parent=11 // pred_check
        %p185 = pneg %p94
      $region18: #{gcn_forward.1} parent=11 // pred_check_branch
        %187 = sbr.rel (%p185) target = $region20
      $region19: #{gcn_forward.1} parent=11 // pred_region
        _
      $region20: #{gcn_forward.1} parent=11 // pred_fallthru
        _
      // Predicated region
      $region21: #{gcn_forward.1} parent=11 // pred_check
        %p188 = pneg %p115
      $region22: #{gcn_forward.1} parent=11 // pred_check_branch
        %190 = sbr.rel (%p188) target = $region24
      $region23: #{gcn_forward.1} parent=11 // pred_region
        _
      $region24: #{gcn_forward.1} parent=11 // pred_fallthru
        _
    $region12: #{gcn_forward.1} parent=5 // pred_fallthru
      _
    %p191 = scmp.lt.s32.totalorder %s12, 2
    // Predicated region
    $region25: #{gcn_forward.1} parent=5 // pred_check
      %p192 = pneg %p191
    $region26: #{gcn_forward.1} parent=5 // pred_check_branch
      %194 = sbr.rel (%p192) target = $region28
    $region27: #{gcn_forward.1} parent=5 // pred_region
      // Predicated region
      $region29: #{gcn_forward.1} parent=27 // pred_check
        %p195 = pneg %p46
      $region30: #{gcn_forward.1} parent=27 // pred_check_branch
        %197 = sbr.rel (%p195) target = $region32
      $region31: #{gcn_forward.1} parent=27 // pred_region
        %s198 = smul.u32 8, %s19
        %p199 = scmp.lt.s32.totalorder %s198, 15
        %s200 = scalar_select %p199, %s198, 15
        %p201 = scmp.lt.s32.totalorder %s20, 0
        %s202 = scalar_select %p201, %s20, 0
        %s203 = sadd.s32 %s202, %s200
        %s204 = smul.addr %s203, 4
        %s205 = scalar_lea.vmem %s0, %s204
        %s206 = smul.u32 8, %s19
      $region32: #{gcn_forward.1} parent=27 // pred_fallthru
        _
    $region28: #{gcn_forward.1} parent=5 // pred_fallthru
      _
    %p207 = scmp.le.s32.totalorder 1, %s12
    %p208 = scmp.lt.s32.totalorder %s12, 3
    %p209 = pnand %p207, %p208
    %p210 = pneg %p209
    // Predicated region
    $region33: #{gcn_forward.1} parent=5 // pred_check
      _
    $region34: #{gcn_forward.1} parent=5 // pred_check_branch
      %212 = sbr.rel (%p209) target = $region36
    $region35: #{gcn_forward.1} parent=5 // pred_region
      %s213 = ssub.s32 %s12, 1
      %s214 = smul.u32 8, %s21
      %p215 = scmp.lt.s32.totalorder %s214, 15
      %s216 = scalar_select %p215, %s214, 15
      %p217 = scmp.lt.s32.totalorder %s22, 0
      %s218 = scalar_select %p217, %s22, 0
      %s219 = sadd.s32 %s218, %s216
      %s220 = smul.addr %s219, 4
      %s221 = scalar_lea.vmem %s0, %s220
      %p222 = pneg %p52
      %p223 = pneg %p49
      %p224 = pneg %p73
      %p225 = pneg %p70
      %p226 = pneg %p94
      %p227 = pneg %p91
      %p228 = pneg %p115
      %p229 = pneg %p112
      %p230 = pneg %p141
      %p231 = pneg %p138
      %s232 = smul.u32 8, %s21
      %p233 = scmp.lt.s32.totalorder %s232, 15
      %s234 = scalar_select %p233, %s232, 15
      %s235 = smul.addr %s234, 8
      %s236 = scalar_lea.vmem %s4, %s235
      %p237 = pneg %p167
      %p238 = pneg %p164
      %s239 = smul.u32 8, %s21
      %p240 = scmp.lt.s32.totalorder %s239, 15
      %s241 = scalar_select %p240, %s239, 15
      %s242 = smul.addr %s241, 2
      %s243 = scalar_lea.vmem %s5, %s242
      %s244 = smul.u32 8, %s21
      %p245 = scmp.lt.s32.totalorder %s244, 15
      %s246 = scalar_select %p245, %s244, 15
      %p247 = scmp.lt.s32.totalorder %s22, 0
      %s248 = scalar_select %p247, %s22, 0
      %s249 = sadd.s32 %s248, %s246
      %s250 = smul.addr %s249, 4
      %s251 = scalar_lea.vmem %s0, %s250
      %s252 = smul.u32 8, %s21
      %s253 = smul.u32 8, %s21
      %p254 = scmp.lt.s32.totalorder %s253, 15
      %s255 = scalar_select %p254, %s253, 15
      %s256 = smul.addr %s255, 8
      %s257 = scalar_lea.vmem %s4, %s256
      %s258 = smul.u32 8, %s21
      %s259 = smul.u32 8, %s21
      %p260 = scmp.lt.s32.totalorder %s259, 15
      %s261 = scalar_select %p260, %s259, 15
      %s262 = smul.addr %s261, 2
      %s263 = scalar_lea.vmem %s5, %s262
      %s264 = smul.u32 8, %s21
      %p268 = scmp.eq.s32.totalorder %s22, 0
      // Predicated region
      $region37: #{gcn_forward.1} parent=35 // pred_check
        %p269 = pneg %p268
      $region38: #{gcn_forward.1} parent=35 // pred_check_branch
        %271 = sbr.rel (%p269) target = $region40
      $region39: #{gcn_forward.1} parent=35 // pred_region
        %272 = vst [vmem:[#allocation2] sm:$0xff] 0.0
        %273 = vst [vmem:[#allocation2 + $0x8] sm:$0xff] 0.0
        %274 = vst [vmem:[#allocation2 + $0x10] sm:$0xff] 0.0
        %275 = vst [vmem:[#allocation2 + $0x18] sm:$0xff] 0.0
        %276 = vst [vmem:[#allocation2 + $0x20] sm:$0xff] 0.0
        %277 = vst [vmem:[#allocation2 + $0x28] sm:$0xff] 0.0
        %278 = vst [vmem:[#allocation2 + $0x30] sm:$0xff] 0.0
        %279 = vst [vmem:[#allocation2 + $0x38] sm:$0xff] 0.0
      $region40: #{gcn_forward.1} parent=35 // pred_fallthru
        _
      %s280 = smul.u32 %s22, 128
      %s281 = sshra.s32 %s280, 3
      %s282 = sand.u32 %s280, 7
      %s283 = smul.addr %s281, 4
      %s284 = scalar_lea.vmem %s1, %s283
      %v285 = vld [vmem:[%s284] sm:$0xf]
      %v286 = vld [vmem:[%s284 + $0x4] sm:$0xf]
      %v287 = vld [vmem:[%s284 + $0x8] sm:$0xf]
      %v288 = vld [vmem:[%s284 + $0xc] sm:$0xf]
      %v289 = vld [vmem:[%s284 + $0x10] sm:$0xf]
      %v290 = vld [vmem:[%s284 + $0x14] sm:$0xf]
      %v291 = vld [vmem:[%s284 + $0x18] sm:$0xf]
      %v292 = vld [vmem:[%s284 + $0x1c] sm:$0xf]
      %v293 = vld [vmem:[%s284 + $0x20] sm:$0xf]
      %v294 = vld [vmem:[%s284 + $0x24] sm:$0xf]
      %v295 = vld [vmem:[%s284 + $0x28] sm:$0xf]
      %v296 = vld [vmem:[%s284 + $0x2c] sm:$0xf]
      %v297 = vld [vmem:[%s284 + $0x30] sm:$0xf]
      %v298 = vld [vmem:[%s284 + $0x34] sm:$0xf]
      %v299 = vld [vmem:[%s284 + $0x38] sm:$0xf]
      %v300 = vld [vmem:[%s284 + $0x3c] sm:$0xf]
      %v301 = vld [vmem:[#allocation2] sm:$0xff]
      %v302 = vld [vmem:[#allocation2 + $0x8] sm:$0xff]
      %v303 = vld [vmem:[#allocation2 + $0x10] sm:$0xff]
      %v304 = vld [vmem:[#allocation2 + $0x18] sm:$0xff]
      %v305 = vld [vmem:[#allocation2 + $0x20] sm:$0xff]
      %v306 = vld [vmem:[#allocation2 + $0x28] sm:$0xff]
      %v307 = vld [vmem:[#allocation2 + $0x30] sm:$0xff]
      %v308 = vld [vmem:[#allocation2 + $0x38] sm:$0xff]
      %v309 = vld [vmem:[%s251] sm:$0xf]
      %v310 = vld [vmem:[%s251 + $0x4] sm:$0xf]
      %v311 = vld [vmem:[%s251 + $0x8] sm:$0xf]
      %v312 = vld [vmem:[%s251 + $0xc] sm:$0xf]
      %v313 = vld [vmem:[%s251 + $0x10] sm:$0xf]
      %v314 = vld [vmem:[%s251 + $0x14] sm:$0xf]
      %v315 = vld [vmem:[%s251 + $0x18] sm:$0xf]
      %v316 = vld [vmem:[%s251 + $0x1c] sm:$0xf]
      %v325 = vunpack.c.l.b16 %v309
      %v326 = vunpack.c.l.b16 %v310
      %v327 = vunpack.c.l.b16 %v311
      %v328 = vunpack.c.l.b16 %v312
      %v329 = vunpack.c.l.b16 %v313
      %v330 = vunpack.c.l.b16 %v314
      %v331 = vunpack.c.l.b16 %v315
      %v332 = vunpack.c.l.b16 %v316
      %v333 = vpack.c.b16 %v326, %v325
      %v334 = vpack.c.b16 %v328, %v327
      %v335 = vpack.c.b16 %v330, %v329
      %v336 = vpack.c.b16 %v332, %v331
      %v357 = vunpack.c.l.b16 %v285
      %v358 = vunpack.c.l.b16 %v286
      %v359 = vunpack.c.l.b16 %v287
      %v360 = vunpack.c.l.b16 %v288
      %v361 = vunpack.c.l.b16 %v289
      %v362 = vunpack.c.l.b16 %v290
      %v363 = vunpack.c.l.b16 %v291
      %v364 = vunpack.c.l.b16 %v292
      %v365 = vunpack.c.l.b16 %v293
      %v366 = vunpack.c.l.b16 %v294
      %v367 = vunpack.c.l.b16 %v295
      %v368 = vunpack.c.l.b16 %v296
      %v369 = vunpack.c.l.b16 %v297
      %v370 = vunpack.c.l.b16 %v298
      %v371 = vunpack.c.l.b16 %v299
      %v372 = vunpack.c.l.b16 %v300
      %v373 = vpack.c.b16 %v358, %v357
      %v374 = vpack.c.b16 %v360, %v359
      %v375 = vpack.c.b16 %v362, %v361
      %v376 = vpack.c.b16 %v364, %v363
      %v377 = vpack.c.b16 %v366, %v365
      %v378 = vpack.c.b16 %v368, %v367
      %v379 = vpack.c.b16 %v370, %v369
      %v380 = vpack.c.b16 %v372, %v371
      %389 = vmatprep.subr.bf16.mxu0 0
      %390 = vmatpush1.bf16.msra.mxu0 %v373
      %391 = vmatprep.subr.bf16.mxu0 0
      %392 = vmatpush1.bf16.msra.mxu0 %v374
      %393 = vmatprep.subr.bf16.mxu0 0
      %394 = vmatpush1.bf16.msra.mxu0 %v375
      %395 = vmatprep.subr.bf16.mxu0 0
      %396 = vmatpush1.bf16.msra.mxu0 %v376
      %397 = vmatprep.subr.bf16.mxu0 0
      %398 = vmatpush1.bf16.msra.mxu0 %v377
      %399 = vmatprep.subr.bf16.mxu0 0
      %400 = vmatpush1.bf16.msra.mxu0 %v378
      %401 = vmatprep.subr.bf16.mxu0 0
      %402 = vmatpush1.bf16.msra.mxu0 %v379
      %403 = vmatprep.subr.bf16.mxu0 0
      %404 = vmatpush1.bf16.msra.mxu0 %v380
      %405 = vmatprep.subr.bf16.mxu0 0
      %406 = vmatpush1.bf16.msra.mxu0 0
      %407 = vmatprep.subr.bf16.mxu0 0
      %408 = vmatpush1.bf16.msra.mxu0 0
      %409 = vmatprep.subr.bf16.mxu0 0
      %410 = vmatpush1.bf16.msra.mxu0 0
      %411 = vmatprep.subr.bf16.mxu0 0
      %412 = vmatpush1.bf16.msra.mxu0 0
      %413 = vmatprep.subr.bf16.mxu0 0
      %414 = vmatpush1.bf16.msra.mxu0 0
      %415 = vmatprep.subr.bf16.mxu0 0
      %416 = vmatpush1.bf16.msra.mxu0 0
      %417 = vmatprep.subr.bf16.mxu0 0
      %418 = vmatpush1.bf16.msra.mxu0 0
      %419 = vmatprep.subr.bf16.mxu0 0
      %420 = vmatpush1.bf16.msra.mxu0 0
      %421 = vmatprep.mubr.bf16.mxu0 0
      %422 = vmatmul.mubr.bf16.gmra.mrb[0].mxu0 %v333
      %v423 = vpop.f32.mrb[0].mxu0
      %v424 = vadd.f32 0.0, %v423
      %v425 = vpop.f32.mrb[0].mxu0
      %v426 = vpop.f32.mrb[0].mxu0
      %v427 = vadd.f32 0.0, %v426
      %v428 = vpop.f32.mrb[0].mxu0
      %429 = vmatprep.mubr.bf16.mxu0 0
      %430 = vmatmul.mubr.bf16.gmra.mrb[0].mxu0 %v334
      %v431 = vpop.f32.mrb[0].mxu0
      %v432 = vadd.f32 0.0, %v431
      %v433 = vpop.f32.mrb[0].mxu0
      %v434 = vpop.f32.mrb[0].mxu0
      %v435 = vadd.f32 0.0, %v434
      %v436 = vpop.f32.mrb[0].mxu0
      %437 = vmatprep.mubr.bf16.mxu0 0
      %438 = vmatmul.mubr.bf16.gmra.mrb[0].mxu0 %v335
      %v439 = vpop.f32.mrb[0].mxu0
      %v440 = vadd.f32 0.0, %v439
      %v441 = vpop.f32.mrb[0].mxu0
      %v442 = vpop.f32.mrb[0].mxu0
      %v443 = vadd.f32 0.0, %v442
      %v444 = vpop.f32.mrb[0].mxu0
      %445 = vmatprep.mubr.bf16.mxu0 0
      %446 = vmatmul.mubr.bf16.gmra.mrb[0].mxu0 %v336
      %v447 = vpop.f32.mrb[0].mxu0
      %v448 = vadd.f32 0.0, %v447
      %v449 = vpop.f32.mrb[0].mxu0
      %v450 = vpop.f32.mrb[0].mxu0
      %v451 = vadd.f32 0.0, %v450
      %v452 = vpop.f32.mrb[0].mxu0
      %453 = vdwg.mxu0
      %v454 = vadd.f32 %v301, %v424
      %v455 = vadd.f32 %v302, %v427
      %v456 = vadd.f32 %v303, %v432
      %v457 = vadd.f32 %v304, %v435
      %v458 = vadd.f32 %v305, %v440
      %v459 = vadd.f32 %v306, %v443
      %v460 = vadd.f32 %v307, %v448
      %v461 = vadd.f32 %v308, %v451
      %462 = vst [vmem:[#allocation2] sm:$0xff] %v454
      %463 = vst [vmem:[#allocation2 + $0x8] sm:$0xff] %v455
      %464 = vst [vmem:[#allocation2 + $0x10] sm:$0xff] %v456
      %465 = vst [vmem:[#allocation2 + $0x18] sm:$0xff] %v457
      %466 = vst [vmem:[#allocation2 + $0x20] sm:$0xff] %v458
      %467 = vst [vmem:[#allocation2 + $0x28] sm:$0xff] %v459
      %468 = vst [vmem:[#allocation2 + $0x30] sm:$0xff] %v460
      %469 = vst [vmem:[#allocation2 + $0x38] sm:$0xff] %v461
      // Predicated region
      $region41: #{gcn_forward.1} parent=35 // pred_check
        %p470 = pneg %p268
      $region42: #{gcn_forward.1} parent=35 // pred_check_branch
        %472 = sbr.rel (%p470) target = $region44
      $region43: #{gcn_forward.1} parent=35 // pred_region
        %v473 = vld [vmem:[#allocation2] sm:$0xff]
        %v474 = vld [vmem:[#allocation2 + $0x8] sm:$0xff]
        %v475 = vld [vmem:[#allocation2 + $0x10] sm:$0xff]
        %v476 = vld [vmem:[#allocation2 + $0x18] sm:$0xff]
        %v477 = vld [vmem:[#allocation2 + $0x20] sm:$0xff]
        %v478 = vld [vmem:[#allocation2 + $0x28] sm:$0xff]
        %v479 = vld [vmem:[#allocation2 + $0x30] sm:$0xff]
        %v480 = vld [vmem:[#allocation2 + $0x38] sm:$0xff]
        %v481 = vpack.c.bf16 %v474, %v473
        %v482 = vpack.c.bf16 %v476, %v475
        %v483 = vpack.c.bf16 %v478, %v477
        %v484 = vpack.c.bf16 %v480, %v479
        %v485 = vld [vmem:[%s2] sm:$0xf]
        %v486 = vld [vmem:[%s2 + $0x4] sm:$0xf]
        %v487 = vld [vmem:[%s2 + $0x8] sm:$0xf]
        %v488 = vld [vmem:[%s2 + $0xc] sm:$0xf]
        %v489 = vld [vmem:[%s2 + $0x10] sm:$0xf]
        %v490 = vld [vmem:[%s2 + $0x14] sm:$0xf]
        %v491 = vld [vmem:[%s2 + $0x18] sm:$0xf]
        %v492 = vld [vmem:[%s2 + $0x1c] sm:$0xf]
        %v493 = vld [vmem:[%s2 + $0x20] sm:$0xf]
        %v494 = vld [vmem:[%s2 + $0x24] sm:$0xf]
        %v495 = vld [vmem:[%s2 + $0x28] sm:$0xf]
        %v496 = vld [vmem:[%s2 + $0x2c] sm:$0xf]
        %v497 = vld [vmem:[%s2 + $0x30] sm:$0xf]
        %v498 = vld [vmem:[%s2 + $0x34] sm:$0xf]
        %v499 = vld [vmem:[%s2 + $0x38] sm:$0xf]
        %v500 = vld [vmem:[%s2 + $0x3c] sm:$0xf]
        %v501 = vld [vmem:[%s3] sm:$0x1]
        %v503 = vlaneseq
        %v504 = vshrl.u32 %v503, 7
        %v505 = vsub.s32 0, %v504
        %v506 = vrot.slane %v501, %v505
        %v524 = vunpack.c.l.b16 %v485
        %v525 = vunpack.c.l.b16 %v486
        %v526 = vunpack.c.l.b16 %v487
        %v527 = vunpack.c.l.b16 %v488
        %v528 = vunpack.c.l.b16 %v489
        %v529 = vunpack.c.l.b16 %v490
        %v530 = vunpack.c.l.b16 %v491
        %v531 = vunpack.c.l.b16 %v492
        %v532 = vunpack.c.l.b16 %v493
        %v533 = vunpack.c.l.b16 %v494
        %v534 = vunpack.c.l.b16 %v495
        %v535 = vunpack.c.l.b16 %v496
        %v536 = vunpack.c.l.b16 %v497
        %v537 = vunpack.c.l.b16 %v498
        %v538 = vunpack.c.l.b16 %v499
        %v539 = vunpack.c.l.b16 %v500
        %v540 = vpack.c.b16 %v525, %v524
        %v541 = vpack.c.b16 %v527, %v526
        %v542 = vpack.c.b16 %v529, %v528
        %v543 = vpack.c.b16 %v531, %v530
        %v544 = vpack.c.b16 %v533, %v532
        %v545 = vpack.c.b16 %v535, %v534
        %v546 = vpack.c.b16 %v537, %v536
        %v547 = vpack.c.b16 %v539, %v538
        %556 = vmatprep.subr.bf16.mxu0 0
        %557 = vmatpush1.bf16.msra.mxu0 %v540
        %558 = vmatprep.subr.bf16.mxu0 0
        %559 = vmatpush1.bf16.msra.mxu0 %v541
        %560 = vmatprep.subr.bf16.mxu0 0
        %561 = vmatpush1.bf16.msra.mxu0 %v542
        %562 = vmatprep.subr.bf16.mxu0 0
        %563 = vmatpush1.bf16.msra.mxu0 %v543
        %564 = vmatprep.subr.bf16.mxu0 0
        %565 = vmatpush1.bf16.msra.mxu0 %v544
        %566 = vmatprep.subr.bf16.mxu0 0
        %567 = vmatpush1.bf16.msra.mxu0 %v545
        %568 = vmatprep.subr.bf16.mxu0 0
        %569 = vmatpush1.bf16.msra.mxu0 %v546
        %570 = vmatprep.subr.bf16.mxu0 0
        %571 = vmatpush1.bf16.msra.mxu0 %v547
        %572 = vmatprep.subr.bf16.mxu0 0
        %573 = vmatpush1.bf16.msra.mxu0 0
        %574 = vmatprep.subr.bf16.mxu0 0
        %575 = vmatpush1.bf16.msra.mxu0 0
        %576 = vmatprep.subr.bf16.mxu0 0
        %577 = vmatpush1.bf16.msra.mxu0 0
        %578 = vmatprep.subr.bf16.mxu0 0
        %579 = vmatpush1.bf16.msra.mxu0 0
        %580 = vmatprep.subr.bf16.mxu0 0
        %581 = vmatpush1.bf16.msra.mxu0 0
        %582 = vmatprep.subr.bf16.mxu0 0
        %583 = vmatpush1.bf16.msra.mxu0 0
        %584 = vmatprep.subr.bf16.mxu0 0
        %585 = vmatpush1.bf16.msra.mxu0 0
        %586 = vmatprep.subr.bf16.mxu0 0
        %587 = vmatpush1.bf16.msra.mxu0 0
        %588 = vmatprep.mubr.bf16.mxu0 0
        %589 = vmatmul.mubr.bf16.gmra.mrb[0].mxu0 %v481
        %v590 = vpop.f32.mrb[0].mxu0
        %v591 = vadd.f32 %v506, %v590
        %v592 = vpop.f32.mrb[0].mxu0
        %v593 = vpop.f32.mrb[0].mxu0
        %v594 = vadd.f32 %v506, %v593
        %v595 = vpop.f32.mrb[0].mxu0
        %596 = vmatprep.mubr.bf16.mxu0 0
        %597 = vmatmul.mubr.bf16.gmra.mrb[0].mxu0 %v482
        %v598 = vpop.f32.mrb[0].mxu0
        %v599 = vadd.f32 %v506, %v598
        %v600 = vpop.f32.mrb[0].mxu0
        %v601 = vpop.f32.mrb[0].mxu0
        %v602 = vadd.f32 %v506, %v601
        %v603 = vpop.f32.mrb[0].mxu0
        %604 = vmatprep.mubr.bf16.mxu0 0
        %605 = vmatmul.mubr.bf16.gmra.mrb[0].mxu0 %v483
        %v606 = vpop.f32.mrb[0].mxu0
        %v607 = vadd.f32 %v506, %v606
        %v608 = vpop.f32.mrb[0].mxu0
        %v609 = vpop.f32.mrb[0].mxu0
        %v610 = vadd.f32 %v506, %v609
        %v611 = vpop.f32.mrb[0].mxu0
        %612 = vmatprep.mubr.bf16.mxu0 0
        %613 = vmatmul.mubr.bf16.gmra.mrb[0].mxu0 %v484
        %v614 = vpop.f32.mrb[0].mxu0
        %v615 = vadd.f32 %v506, %v614
        %v616 = vpop.f32.mrb[0].mxu0
        %v617 = vpop.f32.mrb[0].mxu0
        %v618 = vadd.f32 %v506, %v617
        %v619 = vpop.f32.mrb[0].mxu0
        %620 = vdwg.mxu0
        %vm621 = vcmp.ge.f32.partialorder %v591, 0.0
        %vm622 = vcmp.ge.f32.partialorder %v594, 0.0
        %vm623 = vcmp.ge.f32.partialorder %v599, 0.0
        %vm624 = vcmp.ge.f32.partialorder %v602, 0.0
        %vm625 = vcmp.ge.f32.partialorder %v607, 0.0
        %vm626 = vcmp.ge.f32.partialorder %v610, 0.0
        %vm627 = vcmp.ge.f32.partialorder %v615, 0.0
        %vm628 = vcmp.ge.f32.partialorder %v618, 0.0
        %v629 = vmul.f32 %v591, 0.01
        %v630 = vmul.f32 %v594, 0.01
        %v631 = vmul.f32 %v599, 0.01
        %v632 = vmul.f32 %v602, 0.01
        %v633 = vmul.f32 %v607, 0.01
        %v634 = vmul.f32 %v610, 0.01
        %v635 = vmul.f32 %v615, 0.01
        %v636 = vmul.f32 %v618, 0.01
        %v637 = vsel %vm621, %v591, %v629
        %v638 = vsel %vm622, %v594, %v630
        %v639 = vsel %vm623, %v599, %v631
        %v640 = vsel %vm624, %v602, %v632
        %v641 = vsel %vm625, %v607, %v633
        %v642 = vsel %vm626, %v610, %v634
        %v643 = vsel %vm627, %v615, %v635
        %v644 = vsel %vm628, %v618, %v636
        %645 = vst [vmem:[%s257] sm:$0xff] %v637
        %646 = vst [vmem:[%s257 + $0x8] sm:$0xff] %v638
        %647 = vst [vmem:[%s257 + $0x10] sm:$0xff] %v639
        %648 = vst [vmem:[%s257 + $0x18] sm:$0xff] %v640
        %649 = vst [vmem:[%s257 + $0x20] sm:$0xff] %v641
        %650 = vst [vmem:[%s257 + $0x28] sm:$0xff] %v642
        %651 = vst [vmem:[%s257 + $0x30] sm:$0xff] %v643
        %652 = vst [vmem:[%s257 + $0x38] sm:$0xff] %v644
        %vm653 = vcmp.ge.f32.partialorder %v637, 0.5
        %vm654 = vcmp.ge.f32.partialorder %v638, 0.5
        %vm655 = vcmp.ge.f32.partialorder %v639, 0.5
        %vm656 = vcmp.ge.f32.partialorder %v640, 0.5
        %vm657 = vcmp.ge.f32.partialorder %v641, 0.5
        %vm658 = vcmp.ge.f32.partialorder %v642, 0.5
        %vm659 = vcmp.ge.f32.partialorder %v643, 0.5
        %vm660 = vcmp.ge.f32.partialorder %v644, 0.5
        %vm661 = vmpackc.low %vm654, %vm653
        %vm662 = vmpackc.low %vm656, %vm655
        %vm663 = vmpackc.even %vm662, %vm661
        %vm664 = vmpackc.low %vm658, %vm657
        %vm665 = vmpackc.low %vm660, %vm659
        %vm666 = vmpackc.even %vm665, %vm664
        %v667 = vsel %vm663, 16843009, 0
        %v668 = vsel %vm666, 16843009, 0
        %v669 = vunpack.c.0.s8 %v667
        %v670 = vunpack.c.1.s8 %v667
        %v671 = vunpack.c.2.s8 %v667
        %v672 = vunpack.c.3.s8 %v667
        %v673 = vunpack.c.0.s8 %v668
        %v674 = vunpack.c.1.s8 %v668
        %v675 = vunpack.c.2.s8 %v668
        %v676 = vunpack.c.3.s8 %v668
        %v677 = vpack.c.b16 %v669, %v669
        %v678 = vpack.c.b8 %v677, %v677
        %v679 = vpack.c.b16 %v670, %v670
        %v680 = vpack.c.b8 %v679, %v679
        %v681 = vpack.c.b16 %v671, %v671
        %v682 = vpack.c.b8 %v681, %v681
        %v683 = vpack.c.b16 %v672, %v672
        %v684 = vpack.c.b8 %v683, %v683
        %v685 = vpack.c.b16 %v673, %v673
        %v686 = vpack.c.b8 %v685, %v685
        %v687 = vpack.c.b16 %v674, %v674
        %v688 = vpack.c.b8 %v687, %v687
        %v689 = vpack.c.b16 %v675, %v675
        %v690 = vpack.c.b8 %v689, %v689
        %v691 = vpack.c.b16 %v676, %v676
        %v692 = vpack.c.b8 %v691, %v691
        %693 = vst [vmem:[%s263] sm:$0x3] %v678
        %694 = vst [vmem:[%s263 + $0x2] sm:$0x3] %v680
        %695 = vst [vmem:[%s263 + $0x4] sm:$0x3] %v682
        %696 = vst [vmem:[%s263 + $0x6] sm:$0x3] %v684
        %697 = vst [vmem:[%s263 + $0x8] sm:$0x3] %v686
        %698 = vst [vmem:[%s263 + $0xa] sm:$0x3] %v688
        %699 = vst [vmem:[%s263 + $0xc] sm:$0x3] %v690
        %700 = vst [vmem:[%s263 + $0xe] sm:$0x3] %v692
      $region44: #{gcn_forward.1} parent=35 // pred_fallthru
        _
      %s701 = smul.u32 8, %s21
      %p702 = scmp.lt.s32.totalorder %s701, 15
      %s703 = scalar_select %p702, %s701, 15
      %s704 = smul.addr %s703, 8
      %s705 = scalar_lea.vmem %s4, %s704
      %s706 = smul.u32 8, %s21
      %p707 = scmp.lt.s32.totalorder %s706, 15
      %s708 = scalar_select %p707, %s706, 15
      %s709 = smul.addr %s708, 2
      %s710 = scalar_lea.vmem %s5, %s709
      // Predicated region
      $region45: #{gcn_forward.1} parent=35 // pred_check
        %p711 = pneg %p138
      $region46: #{gcn_forward.1} parent=35 // pred_check_branch
        %713 = sbr.rel (%p711) target = $region48
      $region47: #{gcn_forward.1} parent=35 // pred_region
        %s714 = smul.u32 8, %s21
      $region48: #{gcn_forward.1} parent=35 // pred_fallthru
        _
      // Predicated region
      $region49: #{gcn_forward.1} parent=35 // pred_check
        %p715 = pneg %p164
      $region50: #{gcn_forward.1} parent=35 // pred_check_branch
        %717 = sbr.rel (%p715) target = $region52
      $region51: #{gcn_forward.1} parent=35 // pred_region
        %s718 = smul.u32 8, %s21
      $region52: #{gcn_forward.1} parent=35 // pred_fallthru
        _
    $region36: #{gcn_forward.1} parent=5 // pred_fallthru
      _
    %p719 = scmp.le.s32.totalorder 2, %s12
    // Predicated region
    $region53: #{gcn_forward.1} parent=5 // pred_check
      %p720 = pneg %p719
    $region54: #{gcn_forward.1} parent=5 // pred_check_branch
      %722 = sbr.rel (%p720) target = $region56
    $region55: #{gcn_forward.1} parent=5 // pred_region
      %s723 = ssub.s32 %s12, 2
      // Predicated region
      $region57: #{gcn_forward.1} parent=55 // pred_check
        %p724 = pneg %p144
      $region58: #{gcn_forward.1} parent=55 // pred_check_branch
        %726 = sbr.rel (%p724) target = $region60
      $region59: #{gcn_forward.1} parent=55 // pred_region
        %s727 = smul.u32 8, %s23
        %p728 = scmp.lt.s32.totalorder %s727, 15
        %s729 = scalar_select %p728, %s727, 15
        %s730 = smul.addr %s729, 8
        %s731 = scalar_lea.vmem %s4, %s730
      $region60: #{gcn_forward.1} parent=55 // pred_fallthru
        _
      // Predicated region
      $region61: #{gcn_forward.1} parent=55 // pred_check
        %p732 = pneg %p170
      $region62: #{gcn_forward.1} parent=55 // pred_check_branch
        %734 = sbr.rel (%p732) target = $region64
      $region63: #{gcn_forward.1} parent=55 // pred_region
        %s735 = smul.u32 8, %s23
        %p736 = scmp.lt.s32.totalorder %s735, 15
        %s737 = scalar_select %p736, %s735, 15
        %s738 = smul.addr %s737, 2
        %s739 = scalar_lea.vmem %s5, %s738
      $region64: #{gcn_forward.1} parent=55 // pred_fallthru
        _
    $region56: #{gcn_forward.1} parent=5 // pred_fallthru
      _
  $region6: #{gcn_forward.1} parent=0 // loop_footer
    %s16 = sadd.s32 1, %s12
  $region7: #{gcn_forward.1} parent=0 // loop_footer_branch
    %11 = sbr.rel target = $region3
  $region8: #{gcn_forward.1} parent=0 // loop_exit
    _

</llo_original>
